<compile_context>
chip_gen: v6e
topology: v6e:2x2x1
jax: 0.10.0
libtpu: 0.0.40
codegen_flags: <defaults>
</compile_context>

<pallas_src>
import functools

import jax
import jax.numpy as jnp
from jax.experimental import pallas as pl
from jax.experimental.pallas import tpu as pltpu

LN_EPS = 1e-5


def _ln_raw(h):
    """LayerNorm normalization only (affine folded into the next Linear)."""
    mu = jnp.mean(h, axis=-1, keepdims=True)
    var = jnp.mean((h - mu) ** 2, axis=-1, keepdims=True)
    return (h - mu) * jax.lax.rsqrt(var + LN_EPS)


def _simba_kernel(n_blocks, action_projected, x_ref, a_ref, *refs):
    """refs = (w0x, [w0a], w1s, w2s, vec_out, vec_hid, out_ref).

    w1s/w2s are stacked (n_blocks, ., .) bf16 weights (LN scale folded into w1).
    vec_out rows: [b0, b2_0..b2_{n-1}, gamma_final, beta_final]   (f32)
    vec_hid rows: [b1'_0..b1'_{n-1}]                               (f32)
    """
    if action_projected:
        w0x_ref, w1s_ref, w2s_ref, vout_ref, vhid_ref, out_ref = refs
        w0a_ref = None
    else:
        w0x_ref, w0a_ref, w1s_ref, w2s_ref, vout_ref, vhid_ref, out_ref = refs

    vout = vout_ref[...]          # (n_blocks + 3, output_size) f32
    vhid = vhid_ref[...]          # (n_blocks, hidden_size)     f32
    b0 = vout[0:1, :]

    # input projection: x @ W0x + action @ W0a + b0  (concat folded away)
    h = jnp.dot(x_ref[...].astype(jnp.bfloat16), w0x_ref[...],
                preferred_element_type=jnp.float32)
    if action_projected:
        h = h + a_ref[...].astype(jnp.float32)       # pre-gathered rows of W0a
    else:
        h = h + jnp.dot(a_ref[...].astype(jnp.bfloat16), w0a_ref[...],
                        preferred_element_type=jnp.float32)
    h = h + b0

    for blk in range(n_blocks):
        w1 = w1s_ref[blk]                     # (output, hidden) bf16, LN-affine folded
        w2 = w2s_ref[blk]                     # (hidden, output) bf16
        b1 = vhid[blk:blk + 1, :]             # (1, hidden) f32 (LN beta folded in)
        b2 = vout[1 + blk:2 + blk, :]         # (1, output) f32
        z = _ln_raw(h)                        # f32 LN stats / residual math
        z = jnp.maximum(
            jnp.dot(z.astype(jnp.bfloat16), w1,
                    preferred_element_type=jnp.float32) + b1, 0.0)
        z = jnp.dot(z.astype(jnp.bfloat16), w2,
                    preferred_element_type=jnp.float32) + b2
        h = h + z                             # residual, f32

    gamma_f = vout[1 + n_blocks:2 + n_blocks, :]
    beta_f = vout[2 + n_blocks:3 + n_blocks, :]
    out_ref[...] = (_ln_raw(h) * gamma_f + beta_f).astype(out_ref.dtype)


def init_params(key, obs_dim, action_size, hidden_size, output_size, n_blocks):
    """Deterministic synthetic parameters (PyTorch-like uniform init), f32."""
    def linear(key, fan_in, fan_out):
        kw, kb = jax.random.split(key)
        bound = 1.0 / jnp.sqrt(fan_in)
        w = jax.random.uniform(kw, (fan_in, fan_out), jnp.float32, -bound, bound)
        b = jax.random.uniform(kb, (1, fan_out), jnp.float32, -bound, bound)
        return w, b

    keys = jax.random.split(key, 1 + 2 * n_blocks)
    params = []
    w0, b0 = linear(keys[0], obs_dim + action_size, output_size)
    params += [w0, b0]
    for i in range(n_blocks):
        params += [
            jnp.ones((1, output_size), jnp.float32),   # LayerNorm gamma
            jnp.zeros((1, output_size), jnp.float32),  # LayerNorm beta
        ]
        w1, b1 = linear(keys[1 + 2 * i], output_size, hidden_size)
        w2, b2 = linear(keys[2 + 2 * i], hidden_size, output_size)
        params += [w1, b1, w2, b2]
    params += [
        jnp.ones((1, output_size), jnp.float32),       # final LayerNorm gamma
        jnp.zeros((1, output_size), jnp.float32),      # final LayerNorm beta
    ]
    return params


def pack_params(params, obs_dim, action_size, hidden_size, output_size, n_blocks,
                weight_dtype=jnp.bfloat16):
    """Fold LN affines into the next Linear, coalesce vectors, stack & cast weights."""
    w0, b0 = params[0], params[1]
    w0x, w0a = w0[:obs_dim], w0[obs_dim:]
    w1s, w2s, b1s, b2s = [], [], [], []
    p = 2
    for _ in range(n_blocks):
        g, be, w1, b1, w2, b2 = params[p:p + 6]
        p += 6
        w1s.append(g.reshape(-1, 1) * w1)     # fold LN scale into w1 (f32)
        b1s.append(b1 + be @ w1)              # fold LN bias into b1  (f32)
        w2s.append(w2)
        b2s.append(b2)
    g_f, b_f = params[p], params[p + 1]
    return dict(
        w0x=w0x.astype(weight_dtype),
        w0a=w0a.astype(weight_dtype),
        w1s=jnp.stack(w1s).astype(weight_dtype),          # (n_blocks, out, hid)
        w2s=jnp.stack(w2s).astype(weight_dtype),          # (n_blocks, hid, out)
        vec_out=jnp.concatenate([b0] + b2s + [g_f, b_f], 0).astype(jnp.float32),
        vec_hid=jnp.concatenate(b1s, 0).astype(jnp.float32),
    )


def simba_encoder_with_action(x, action, packed, *, action_size, n_blocks,
                              output_size, discrete_action=False, tile_b=256):
    x = x.astype(jnp.float32)
    B, obs_dim = x.shape
    hidden_size = packed["vec_hid"].shape[1]

    if discrete_action:
        # Row-gather of W0a replaces one_hot + matmul.
        # TODO(synk): could be moved in-kernel via PrefetchScalarGridSpec index gather.
        idx = action.reshape(-1).astype(jnp.int32)
        a_in = jnp.take(packed["w0a"].astype(jnp.float32), idx, axis=0)  # (B, output)
        action_projected = True
    else:
        a_in = action.astype(jnp.float32)
        action_projected = False

    TILE_B = min(B, tile_b)                       # full B if small, else 256 (mult of 8)
    grid = (pl.cdiv(B, TILE_B),)

    kernel = functools.partial(_simba_kernel, n_blocks, action_projected)

    param_keys = (["w0x"] if action_projected else ["w0x", "w0a"]) + \
                 ["w1s", "w2s", "vec_out", "vec_hid"]
    param_args = [packed[k] for k in param_keys]

    def batch_spec(feat):
        return pl.BlockSpec((TILE_B, feat), lambda i: (i, 0))

    def resident_spec(shape):
        nd = len(shape)
        return pl.BlockSpec(shape, lambda i, _nd=nd: (0,) * _nd)

    in_specs = [batch_spec(obs_dim), batch_spec(a_in.shape[1])] + \
               [resident_spec(p.shape) for p in param_args]
    out_specs = batch_spec(output_size)

    flops = 2 * B * (obs_dim * output_size
                     + (0 if action_projected else a_in.shape[1] * output_size)
                     + n_blocks * 2 * output_size * hidden_size)
    bytes_accessed = int(sum(v.size * v.dtype.itemsize for v in [x, a_in] + param_args)
                         + B * output_size * 4)
    cost = pl.CostEstimate(flops=flops,
                           transcendentals=B * (n_blocks + 1),
                           bytes_accessed=bytes_accessed)

    return pl.pallas_call(
        kernel,
        out_shape=jax.ShapeDtypeStruct((B, output_size), jnp.float32),
        grid=grid,
        in_specs=in_specs,
        out_specs=out_specs,
        compiler_params=pltpu.CompilerParams(dimension_semantics=("parallel",)),
        cost_estimate=cost,
    )(x, a_in, *param_args)


def _reference(h, params, n_blocks):
    """Pure-JAX f32 reference with the raw (unfolded) parameters."""
    def ln(v, g, b):
        mu = jnp.mean(v, axis=-1, keepdims=True)
        var = jnp.mean((v - mu) ** 2, axis=-1, keepdims=True)
        return (v - mu) * jax.lax.rsqrt(var + LN_EPS) * g + b

    w0, b0 = params[0], params[1]
    out = h @ w0 + b0
    p = 2
    for _ in range(n_blocks):
        g, be, w1, b1, w2, b2 = params[p:p + 6]
        p += 6
        z = ln(out, g, be)
        z = jnp.maximum(z @ w1 + b1, 0.0)
        out = out + (z @ w2 + b2)
    g_f, b_f = params[p], params[p + 1]
    return ln(out, g_f, b_f)


if __name__ == "__main__":
    obs_dim, action_size = 24, 8
    hidden_size, output_size, n_blocks = 64, 32, 2
    batch = 8

    key = jax.random.PRNGKey(0)
    kx, ka, kp, kd = jax.random.split(key, 4)
    x = jax.random.normal(kx, (batch, obs_dim), jnp.float32)
    action = jax.random.normal(ka, (batch, action_size), jnp.float32)

    params = init_params(kp, obs_dim, action_size, hidden_size, output_size, n_blocks)
    packed = pack_params(params, obs_dim, action_size, hidden_size, output_size, n_blocks)

    # continuous-action path
    out = simba_encoder_with_action(
        x, action, packed,
        action_size=action_size, n_blocks=n_blocks,
        output_size=output_size, discrete_action=False,
    )
    out = jax.block_until_ready(out)
    ref = _reference(jnp.concatenate([x, action], axis=1), params, n_blocks)
    assert out.shape == (batch, output_size)
    # loose tolerance: kernel uses bf16 weights with f32 accumulation
    assert jnp.allclose(out, ref, atol=5e-2, rtol=5e-2), \
        float(jnp.max(jnp.abs(out - ref)))

    # discrete-action path (one_hot replaced by row gather of W0a)
    action_d = jax.random.randint(kd, (batch,), 0, action_size)
    out_d = simba_encoder_with_action(
        x, action_d, packed,
        action_size=action_size, n_blocks=n_blocks,
        output_size=output_size, discrete_action=True,
    )
    out_d = jax.block_until_ready(out_d)
    onehot = jax.nn.one_hot(action_d, action_size, dtype=jnp.float32)
    ref_d = _reference(jnp.concatenate([x, onehot], axis=1), params, n_blocks)
    assert jnp.allclose(out_d, ref_d, atol=5e-2, rtol=5e-2), \
        float(jnp.max(jnp.abs(out_d - ref_d)))

    print("KERNEL_OK")
</pallas_src>

<mosaic_0001>
module attributes {stable_mosaic.version = 11 : i64} {
  func.func @_simba_kernel(%arg0: i32, %arg1: memref<8x24xf32, #tpu.memory_space<vmem>>, %arg2: memref<8x8xf32, #tpu.memory_space<vmem>>, %arg3: memref<24x32xbf16, #tpu.memory_space<vmem>>, %arg4: memref<8x32xbf16, #tpu.memory_space<vmem>>, %arg5: memref<2x32x64xbf16, #tpu.memory_space<vmem>>, %arg6: memref<2x64x32xbf16, #tpu.memory_space<vmem>>, %arg7: memref<5x32xf32, #tpu.memory_space<vmem>>, %arg8: memref<2x64xf32, #tpu.memory_space<vmem>>, %arg9: memref<8x32xf32, #tpu.memory_space<vmem>>) attributes {dimension_semantics = [#tpu.dimension_semantics<parallel>], iteration_bounds = array<i64: 1>, scalar_prefetch = 0 : i64, scratch_operands = 0 : i64, tpu.core_type = #tpu.core_type<tc>, window_params = [{transform_indices = @transform_0, window_bounds = array<i64: 8, 24>}, {transform_indices = @transform_1, window_bounds = array<i64: 8, 8>}, {pipeline_mode = #tpu.pipeline_mode<synchronous>, transform_indices = @transform_2, window_bounds = array<i64: 24, 32>}, {pipeline_mode = #tpu.pipeline_mode<synchronous>, transform_indices = @transform_3, window_bounds = array<i64: 8, 32>}, {pipeline_mode = #tpu.pipeline_mode<synchronous>, transform_indices = @transform_4, window_bounds = array<i64: 2, 32, 64>}, {pipeline_mode = #tpu.pipeline_mode<synchronous>, transform_indices = @transform_5, window_bounds = array<i64: 2, 64, 32>}, {pipeline_mode = #tpu.pipeline_mode<synchronous>, transform_indices = @transform_6, window_bounds = array<i64: 5, 32>}, {pipeline_mode = #tpu.pipeline_mode<synchronous>, transform_indices = @transform_7, window_bounds = array<i64: 2, 64>}, {transform_indices = @transform_8, window_bounds = array<i64: 8, 32>}]} {
    %c0 = arith.constant 0 : index
    %c0_0 = arith.constant 0 : index
    %0 = vector.load %arg7[%c0, %c0_0] : memref<5x32xf32, #tpu.memory_space<vmem>>, vector<5x32xf32>
    %c0_1 = arith.constant 0 : index
    %c0_2 = arith.constant 0 : index
    %1 = vector.load %arg8[%c0_1, %c0_2] : memref<2x64xf32, #tpu.memory_space<vmem>>, vector<2x64xf32>
    %2 = vector.extract_strided_slice %0 {offsets = [0, 0], sizes = [1, 32], strides = [1, 1]} : vector<5x32xf32> to vector<1x32xf32>
    %c0_3 = arith.constant 0 : index
    %c0_4 = arith.constant 0 : index
    %3 = vector.load %arg1[%c0_3, %c0_4] : memref<8x24xf32, #tpu.memory_space<vmem>>, vector<8x24xf32>
    %4 = arith.truncf %3 : vector<8x24xf32> to vector<8x24xbf16>
    %c0_5 = arith.constant 0 : index
    %c0_6 = arith.constant 0 : index
    %5 = vector.load %arg3[%c0_5, %c0_6] : memref<24x32xbf16, #tpu.memory_space<vmem>>, vector<24x32xbf16>
    %cst = arith.constant dense<0.000000e+00> : vector<8x32xf32>
    %6 = tpu.matmul %4, %5, %cst {dimension_numbers = #tpu.dot_dimension_numbers<[1], [0], [0], [1], [0, 0, 1, 1], [], []>} : vector<8x24xbf16>, vector<24x32xbf16>, vector<8x32xf32> -> vector<8x32xf32>
    %c0_7 = arith.constant 0 : index
    %c0_8 = arith.constant 0 : index
    %7 = vector.load %arg2[%c0_7, %c0_8] : memref<8x8xf32, #tpu.memory_space<vmem>>, vector<8x8xf32>
    %8 = arith.truncf %7 : vector<8x8xf32> to vector<8x8xbf16>
    %c0_9 = arith.constant 0 : index
    %c0_10 = arith.constant 0 : index
    %9 = vector.load %arg4[%c0_9, %c0_10] : memref<8x32xbf16, #tpu.memory_space<vmem>>, vector<8x32xbf16>
    %cst_11 = arith.constant dense<0.000000e+00> : vector<8x32xf32>
    %10 = tpu.matmul %8, %9, %cst_11 {dimension_numbers = #tpu.dot_dimension_numbers<[1], [0], [0], [1], [0, 0, 1, 1], [], []>} : vector<8x8xbf16>, vector<8x32xbf16>, vector<8x32xf32> -> vector<8x32xf32>
    %11 = arith.addf %6, %10 : vector<8x32xf32>
    %12 = vector.broadcast %2 : vector<1x32xf32> to vector<8x32xf32>
    %13 = arith.addf %11, %12 : vector<8x32xf32>
    %c0_12 = arith.constant 0 : index
    %c0_13 = arith.constant 0 : index
    %c0_14 = arith.constant 0 : index
    %14 = vector.load %arg5[%c0_12, %c0_13, %c0_14] : memref<2x32x64xbf16, #tpu.memory_space<vmem>>, vector<1x32x64xbf16>
    %15 = vector.shape_cast %14 : vector<1x32x64xbf16> to vector<32x64xbf16>
    %c0_15 = arith.constant 0 : index
    %c0_16 = arith.constant 0 : index
    %c0_17 = arith.constant 0 : index
    %16 = vector.load %arg6[%c0_15, %c0_16, %c0_17] : memref<2x64x32xbf16, #tpu.memory_space<vmem>>, vector<1x64x32xbf16>
    %17 = vector.shape_cast %16 : vector<1x64x32xbf16> to vector<64x32xbf16>
    %18 = vector.extract_strided_slice %1 {offsets = [0, 0], sizes = [1, 64], strides = [1, 1]} : vector<2x64xf32> to vector<1x64xf32>
    %19 = vector.extract_strided_slice %0 {offsets = [1, 0], sizes = [1, 32], strides = [1, 1]} : vector<5x32xf32> to vector<1x32xf32>
    %cst_18 = arith.constant dense<0.000000e+00> : vector<8xf32>
    %20 = vector.multi_reduction <add>, %13, %cst_18 [1] : vector<8x32xf32> to vector<8xf32>
    %21 = vector.shape_cast %20 : vector<8xf32> to vector<8x1xf32>
    %cst_19 = arith.constant 3.200000e+01 : f32
    %22 = vector.broadcast %cst_19 : f32 to vector<8x1xf32>
    %23 = arith.divf %21, %22 : vector<8x1xf32>
    %24 = vector.broadcast %23 : vector<8x1xf32> to vector<8x32xf32>
    %25 = arith.subf %13, %24 : vector<8x32xf32>
    %26 = arith.mulf %25, %25 : vector<8x32xf32>
    %cst_20 = arith.constant dense<0.000000e+00> : vector<8xf32>
    %27 = vector.multi_reduction <add>, %26, %cst_20 [1] : vector<8x32xf32> to vector<8xf32>
    %28 = vector.shape_cast %27 : vector<8xf32> to vector<8x1xf32>
    %cst_21 = arith.constant 3.200000e+01 : f32
    %29 = vector.broadcast %cst_21 : f32 to vector<8x1xf32>
    %30 = arith.divf %28, %29 : vector<8x1xf32>
    %31 = vector.broadcast %23 : vector<8x1xf32> to vector<8x32xf32>
    %32 = arith.subf %13, %31 : vector<8x32xf32>
    %cst_22 = arith.constant 9.99999974E-6 : f32
    %33 = vector.broadcast %cst_22 : f32 to vector<8x1xf32>
    %34 = arith.addf %30, %33 : vector<8x1xf32>
    %35 = math.rsqrt %34 : vector<8x1xf32>
    %36 = vector.broadcast %35 : vector<8x1xf32> to vector<8x32xf32>
    %37 = arith.mulf %32, %36 : vector<8x32xf32>
    %38 = arith.truncf %37 : vector<8x32xf32> to vector<8x32xbf16>
    %cst_23 = arith.constant dense<0.000000e+00> : vector<8x64xf32>
    %39 = tpu.matmul %38, %15, %cst_23 {dimension_numbers = #tpu.dot_dimension_numbers<[1], [0], [0], [1], [0, 0, 1, 1], [], []>} : vector<8x32xbf16>, vector<32x64xbf16>, vector<8x64xf32> -> vector<8x64xf32>
    %40 = vector.broadcast %18 : vector<1x64xf32> to vector<8x64xf32>
    %41 = arith.addf %39, %40 : vector<8x64xf32>
    %cst_24 = arith.constant 0.000000e+00 : f32
    %42 = vector.broadcast %cst_24 : f32 to vector<8x64xf32>
    %43 = arith.maximumf %41, %42 : vector<8x64xf32>
    %44 = arith.truncf %43 : vector<8x64xf32> to vector<8x64xbf16>
    %cst_25 = arith.constant dense<0.000000e+00> : vector<8x32xf32>
    %45 = tpu.matmul %44, %17, %cst_25 {dimension_numbers = #tpu.dot_dimension_numbers<[1], [0], [0], [1], [0, 0, 1, 1], [], []>} : vector<8x64xbf16>, vector<64x32xbf16>, vector<8x32xf32> -> vector<8x32xf32>
    %46 = vector.broadcast %19 : vector<1x32xf32> to vector<8x32xf32>
    %47 = arith.addf %45, %46 : vector<8x32xf32>
    %48 = arith.addf %13, %47 : vector<8x32xf32>
    %c1 = arith.constant 1 : index
    %c0_26 = arith.constant 0 : index
    %c0_27 = arith.constant 0 : index
    %49 = vector.load %arg5[%c1, %c0_26, %c0_27] : memref<2x32x64xbf16, #tpu.memory_space<vmem>>, vector<1x32x64xbf16>
    %50 = vector.shape_cast %49 : vector<1x32x64xbf16> to vector<32x64xbf16>
    %c1_28 = arith.constant 1 : index
    %c0_29 = arith.constant 0 : index
    %c0_30 = arith.constant 0 : index
    %51 = vector.load %arg6[%c1_28, %c0_29, %c0_30] : memref<2x64x32xbf16, #tpu.memory_space<vmem>>, vector<1x64x32xbf16>
    %52 = vector.shape_cast %51 : vector<1x64x32xbf16> to vector<64x32xbf16>
    %53 = vector.extract_strided_slice %1 {offsets = [1, 0], sizes = [1, 64], strides = [1, 1]} : vector<2x64xf32> to vector<1x64xf32>
    %54 = vector.extract_strided_slice %0 {offsets = [2, 0], sizes = [1, 32], strides = [1, 1]} : vector<5x32xf32> to vector<1x32xf32>
    %cst_31 = arith.constant dense<0.000000e+00> : vector<8xf32>
    %55 = vector.multi_reduction <add>, %48, %cst_31 [1] : vector<8x32xf32> to vector<8xf32>
    %56 = vector.shape_cast %55 : vector<8xf32> to vector<8x1xf32>
    %cst_32 = arith.constant 3.200000e+01 : f32
    %57 = vector.broadcast %cst_32 : f32 to vector<8x1xf32>
    %58 = arith.divf %56, %57 : vector<8x1xf32>
    %59 = vector.broadcast %58 : vector<8x1xf32> to vector<8x32xf32>
    %60 = arith.subf %48, %59 : vector<8x32xf32>
    %61 = arith.mulf %60, %60 : vector<8x32xf32>
    %cst_33 = arith.constant dense<0.000000e+00> : vector<8xf32>
    %62 = vector.multi_reduction <add>, %61, %cst_33 [1] : vector<8x32xf32> to vector<8xf32>
    %63 = vector.shape_cast %62 : vector<8xf32> to vector<8x1xf32>
    %cst_34 = arith.constant 3.200000e+01 : f32
    %64 = vector.broadcast %cst_34 : f32 to vector<8x1xf32>
    %65 = arith.divf %63, %64 : vector<8x1xf32>
    %66 = vector.broadcast %58 : vector<8x1xf32> to vector<8x32xf32>
    %67 = arith.subf %48, %66 : vector<8x32xf32>
    %cst_35 = arith.constant 9.99999974E-6 : f32
    %68 = vector.broadcast %cst_35 : f32 to vector<8x1xf32>
    %69 = arith.addf %65, %68 : vector<8x1xf32>
    %70 = math.rsqrt %69 : vector<8x1xf32>
    %71 = vector.broadcast %70 : vector<8x1xf32> to vector<8x32xf32>
    %72 = arith.mulf %67, %71 : vector<8x32xf32>
    %73 = arith.truncf %72 : vector<8x32xf32> to vector<8x32xbf16>
    %cst_36 = arith.constant dense<0.000000e+00> : vector<8x64xf32>
    %74 = tpu.matmul %73, %50, %cst_36 {dimension_numbers = #tpu.dot_dimension_numbers<[1], [0], [0], [1], [0, 0, 1, 1], [], []>} : vector<8x32xbf16>, vector<32x64xbf16>, vector<8x64xf32> -> vector<8x64xf32>
    %75 = vector.broadcast %53 : vector<1x64xf32> to vector<8x64xf32>
    %76 = arith.addf %74, %75 : vector<8x64xf32>
    %cst_37 = arith.constant 0.000000e+00 : f32
    %77 = vector.broadcast %cst_37 : f32 to vector<8x64xf32>
    %78 = arith.maximumf %76, %77 : vector<8x64xf32>
    %79 = arith.truncf %78 : vector<8x64xf32> to vector<8x64xbf16>
    %cst_38 = arith.constant dense<0.000000e+00> : vector<8x32xf32>
    %80 = tpu.matmul %79, %52, %cst_38 {dimension_numbers = #tpu.dot_dimension_numbers<[1], [0], [0], [1], [0, 0, 1, 1], [], []>} : vector<8x64xbf16>, vector<64x32xbf16>, vector<8x32xf32> -> vector<8x32xf32>
    %81 = vector.broadcast %54 : vector<1x32xf32> to vector<8x32xf32>
    %82 = arith.addf %80, %81 : vector<8x32xf32>
    %83 = arith.addf %48, %82 : vector<8x32xf32>
    %84 = vector.extract_strided_slice %0 {offsets = [3, 0], sizes = [1, 32], strides = [1, 1]} : vector<5x32xf32> to vector<1x32xf32>
    %85 = vector.extract_strided_slice %0 {offsets = [4, 0], sizes = [1, 32], strides = [1, 1]} : vector<5x32xf32> to vector<1x32xf32>
    %cst_39 = arith.constant dense<0.000000e+00> : vector<8xf32>
    %86 = vector.multi_reduction <add>, %83, %cst_39 [1] : vector<8x32xf32> to vector<8xf32>
    %87 = vector.shape_cast %86 : vector<8xf32> to vector<8x1xf32>
    %cst_40 = arith.constant 3.200000e+01 : f32
    %88 = vector.broadcast %cst_40 : f32 to vector<8x1xf32>
    %89 = arith.divf %87, %88 : vector<8x1xf32>
    %90 = vector.broadcast %89 : vector<8x1xf32> to vector<8x32xf32>
    %91 = arith.subf %83, %90 : vector<8x32xf32>
    %92 = arith.mulf %91, %91 : vector<8x32xf32>
    %cst_41 = arith.constant dense<0.000000e+00> : vector<8xf32>
    %93 = vector.multi_reduction <add>, %92, %cst_41 [1] : vector<8x32xf32> to vector<8xf32>
    %94 = vector.shape_cast %93 : vector<8xf32> to vector<8x1xf32>
    %cst_42 = arith.constant 3.200000e+01 : f32
    %95 = vector.broadcast %cst_42 : f32 to vector<8x1xf32>
    %96 = arith.divf %94, %95 : vector<8x1xf32>
    %97 = vector.broadcast %89 : vector<8x1xf32> to vector<8x32xf32>
    %98 = arith.subf %83, %97 : vector<8x32xf32>
    %cst_43 = arith.constant 9.99999974E-6 : f32
    %99 = vector.broadcast %cst_43 : f32 to vector<8x1xf32>
    %100 = arith.addf %96, %99 : vector<8x1xf32>
    %101 = math.rsqrt %100 : vector<8x1xf32>
    %102 = vector.broadcast %101 : vector<8x1xf32> to vector<8x32xf32>
    %103 = arith.mulf %98, %102 : vector<8x32xf32>
    %104 = vector.broadcast %84 : vector<1x32xf32> to vector<8x32xf32>
    %105 = arith.mulf %103, %104 : vector<8x32xf32>
    %106 = vector.broadcast %85 : vector<1x32xf32> to vector<8x32xf32>
    %107 = arith.addf %105, %106 : vector<8x32xf32>
    %c0_44 = arith.constant 0 : index
    %c0_45 = arith.constant 0 : index
    %108 = vector.load %arg9[%c0_44, %c0_45] : memref<8x32xf32, #tpu.memory_space<vmem>>, vector<8x32xf32>
    tpu.vector_store %arg9[%c0_44, %c0_45], %107 {strides = array<i32>} : memref<8x32xf32, #tpu.memory_space<vmem>>, vector<8x32xf32>,
    return
  }
  func.func @transform_0(%arg0: i32) -> (i32, i32) {
    %c0_i32 = arith.constant 0 : i32
    %c0_i32_0 = arith.constant 0 : i32
    return %arg0, %c0_i32 : i32, i32
  }
  func.func @transform_1(%arg0: i32) -> (i32, i32) {
    %c0_i32 = arith.constant 0 : i32
    %c0_i32_0 = arith.constant 0 : i32
    return %arg0, %c0_i32 : i32, i32
  }
  func.func @transform_2(%arg0: i32) -> (i32, i32) {
    %c0_i32 = arith.constant 0 : i32
    %c0_i32_0 = arith.constant 0 : i32
    %c0_i32_1 = arith.constant 0 : i32
    return %c0_i32, %c0_i32_0 : i32, i32
  }
  func.func @transform_3(%arg0: i32) -> (i32, i32) {
    %c0_i32 = arith.constant 0 : i32
    %c0_i32_0 = arith.constant 0 : i32
    %c0_i32_1 = arith.constant 0 : i32
    return %c0_i32, %c0_i32_0 : i32, i32
  }
  func.func @transform_4(%arg0: i32) -> (i32, i32, i32) {
    %c0_i32 = arith.constant 0 : i32
    %c0_i32_0 = arith.constant 0 : i32
    %c0_i32_1 = arith.constant 0 : i32
    %c0_i32_2 = arith.constant 0 : i32
    return %c0_i32, %c0_i32_0, %c0_i32_1 : i32, i32, i32
  }
  func.func @transform_5(%arg0: i32) -> (i32, i32, i32) {
    %c0_i32 = arith.constant 0 : i32
    %c0_i32_0 = arith.constant 0 : i32
    %c0_i32_1 = arith.constant 0 : i32
    %c0_i32_2 = arith.constant 0 : i32
    return %c0_i32, %c0_i32_0, %c0_i32_1 : i32, i32, i32
  }
  func.func @transform_6(%arg0: i32) -> (i32, i32) {
    %c0_i32 = arith.constant 0 : i32
    %c0_i32_0 = arith.constant 0 : i32
    %c0_i32_1 = arith.constant 0 : i32
    return %c0_i32, %c0_i32_0 : i32, i32
  }
  func.func @transform_7(%arg0: i32) -> (i32, i32) {
    %c0_i32 = arith.constant 0 : i32
    %c0_i32_0 = arith.constant 0 : i32
    %c0_i32_1 = arith.constant 0 : i32
    return %c0_i32, %c0_i32_0 : i32, i32
  }
  func.func @transform_8(%arg0: i32) -> (i32, i32) {
    %c0_i32 = arith.constant 0 : i32
    %c0_i32_0 = arith.constant 0 : i32
    return %arg0, %c0_i32 : i32, i32
  }
}

</mosaic_0001>

<llo_original>
// kernel: tpu_custom_call.1
$region0: #{tpu_custom_call.1}
  #allocation0 [shape = 'u32[]', space=smem, size = 0x4, offset = 0x4, fixed_abs, tag = 'smem constant byte address 0x4 - core index']
  #allocation1 [shape = 'u32[144,128]{1,0:T(1,128)}', space=vmem, size = 0x12000, scoped, tag = 'internal scratch']
  %s0 = inlined_call_operand.vmem [shape: f32[8,24], index: 0, kind: input, shape index: {}]
  %s1 = inlined_call_operand.vmem [shape: f32[8,8], index: 1, kind: input, shape index: {}]
  %s2 = inlined_call_operand.vmem [shape: bf16[24,32], index: 2, kind: input, shape index: {}]
  %s3 = inlined_call_operand.vmem [shape: bf16[8,32], index: 3, kind: input, shape index: {}]
  %s4 = inlined_call_operand.vmem [shape: bf16[2,32,64], index: 4, kind: input, shape index: {}]
  %s5 = inlined_call_operand.vmem [shape: bf16[2,64,32], index: 5, kind: input, shape index: {}]
  %s6 = inlined_call_operand.vmem [shape: f32[5,32], index: 6, kind: input, shape index: {}]
  %s7 = inlined_call_operand.vmem [shape: f32[2,64], index: 7, kind: input, shape index: {}]
  %s8 = inlined_call_operand.hbm [shape: f32[8,32], index: 8, kind: output, shape index: {}]
  %s9 = sld [smem:[#allocation0]]
  $region42: #{tpu_custom_call.1} parent=0
    _
  %s11 = ssub.s32 1, %s9
  %s12 = scalar_select 0, %s11, %s9
  $region1: #{tpu_custom_call.1} parent=0
    #allocation2 [shape = 'u8[4096]{0}', space=vmem, size = 0x1000, scoped, tag = 'output window, operand 0, single buffered']
    #allocation3 [shape = 's32[1]{0}', space=sflag, size = 0x4, scoped, tag = 'scoped memory for tpu_custom_call.1']
    %13 = vsyncpa [#allocation3], 0
    // Predicated region
    $region2: #{tpu_custom_call.1} parent=1 // pred_check
      _
    $region3: #{tpu_custom_call.1} parent=1 // pred_check_branch
      %15 = sbr.rel (0) target = $region5
    $region4: #{tpu_custom_call.1} parent=1 // pred_region
      _
    $region5: #{tpu_custom_call.1} parent=1 // pred_fallthru
      _
    // Predicated region
    $region6: #{tpu_custom_call.1} parent=1 // pred_check
      _
    $region7: #{tpu_custom_call.1} parent=1 // pred_check_branch
      %17 = sbr.rel (0) target = $region9
    $region8: #{tpu_custom_call.1} parent=1 // pred_region
      _
    $region9: #{tpu_custom_call.1} parent=1 // pred_fallthru
      _
    // Predicated region
    $region10: #{tpu_custom_call.1} parent=1 // pred_check
      _
    $region11: #{tpu_custom_call.1} parent=1 // pred_check_branch
      %19 = sbr.rel (0) target = $region13
    $region12: #{tpu_custom_call.1} parent=1 // pred_region
      _
    $region13: #{tpu_custom_call.1} parent=1 // pred_fallthru
      _
    // Predicated region
    $region14: #{tpu_custom_call.1} parent=1 // pred_check
      _
    $region15: #{tpu_custom_call.1} parent=1 // pred_check_branch
      %21 = sbr.rel (0) target = $region17
    $region16: #{tpu_custom_call.1} parent=1 // pred_region
      _
    $region17: #{tpu_custom_call.1} parent=1 // pred_fallthru
      _
    // Predicated region
    $region18: #{tpu_custom_call.1} parent=1 // pred_check
      _
    $region19: #{tpu_custom_call.1} parent=1 // pred_check_branch
      %23 = sbr.rel (0) target = $region21
    $region20: #{tpu_custom_call.1} parent=1 // pred_region
      _
    $region21: #{tpu_custom_call.1} parent=1 // pred_fallthru
      _
    // Predicated region
    $region22: #{tpu_custom_call.1} parent=1 // pred_check
      _
    $region23: #{tpu_custom_call.1} parent=1 // pred_check_branch
      %25 = sbr.rel (0) target = $region25
    $region24: #{tpu_custom_call.1} parent=1 // pred_region
      _
    $region25: #{tpu_custom_call.1} parent=1 // pred_fallthru
      _
    // Predicated region
    $region26: #{tpu_custom_call.1} parent=1 // pred_check
      _
    $region27: #{tpu_custom_call.1} parent=1 // pred_check_branch
      %27 = sbr.rel (0) target = $region29
    $region28: #{tpu_custom_call.1} parent=1 // pred_region
      _
    $region29: #{tpu_custom_call.1} parent=1 // pred_fallthru
      _
    // Predicated region
    $region30: #{tpu_custom_call.1} parent=1 // pred_check
      _
    $region31: #{tpu_custom_call.1} parent=1 // pred_check_branch
      %29 = sbr.rel (0) target = $region33
    $region32: #{tpu_custom_call.1} parent=1 // pred_region
      _
    $region33: #{tpu_custom_call.1} parent=1 // pred_fallthru
      _
    %v31 = vld [vmem:[%s6] sm:$0x1f]
    %v32 = vld [vmem:[%s7] sm:$0x3]
    %v33 = vld [vmem:[%s0] sm:$0xff]
    %v34 = vpack.c.bf16 %v33, %v33
    %v35 = vld [vmem:[%s2] sm:$0xf]
    %v36 = vld [vmem:[%s2 + $0x4] sm:$0xf]
    %v37 = vld [vmem:[%s2 + $0x8] sm:$0xf]
    %v38 = vld [vmem:[%s1] sm:$0xff]
    %v39 = vpack.c.bf16 %v38, %v38
    %v40 = vld [vmem:[%s3] sm:$0xf]
    %vm41 = vcmask 64512
    %v43 = vsel %vm41, %v39, 0
    %vm45 = vcmask 1043456
    %v47 = vsel %vm45, %v40, 0
    %49 = vmatprep.subr.bf16.mxu0 0
    %50 = vmatpush1.bf16.msra.mxu0 0
    %51 = vmatprep.subr.bf16.mxu0 0
    %52 = vmatpush1.bf16.msra.mxu0 0
    %53 = vmatprep.subr.bf16.mxu0 0
    %54 = vmatpush1.bf16.msra.mxu0 0
    %55 = vmatprep.subr.bf16.mxu0 0
    %56 = vmatpush1.bf16.msra.mxu0 0
    %57 = vmatprep.subr.bf16.mxu0 0
    %58 = vmatpush1.bf16.msra.mxu0 0
    %59 = vmatprep.subr.bf16.mxu0 0
    %60 = vmatpush1.bf16.msra.mxu0 0
    %61 = vmatprep.subr.bf16.mxu0 0
    %62 = vmatpush1.bf16.msra.mxu0 0
    %63 = vmatprep.subr.bf16.mxu0 0
    %64 = vmatpush1.bf16.msra.mxu0 %v47
    %65 = vmatprep.subr.bf16.mxu0 0
    %66 = vmatpush2.bf16.msra.mxu0 0
    %67 = vmatprep.subr.bf16.mxu0 0
    %68 = vmatpush2.bf16.msra.mxu0 0
    %69 = vmatprep.subr.bf16.mxu0 0
    %70 = vmatpush2.bf16.msra.mxu0 0
    %71 = vmatprep.subr.bf16.mxu0 0
    %72 = vmatpush2.bf16.msra.mxu0 0
    %73 = vmatprep.subr.bf16.mxu0 0
    %74 = vmatpush2.bf16.msra.mxu0 0
    %75 = vmatprep.subr.bf16.mxu0 0
    %76 = vmatpush2.bf16.msra.mxu0 0
    %77 = vmatprep.subr.bf16.mxu0 0
    %78 = vmatpush2.bf16.msra.mxu0 0
    %79 = vmatprep.subr.bf16.mxu0 0
    %80 = vmatpush2.bf16.msra.mxu0 0
    %81 = vmatprep.mubr.bf16.mxu0 0
    %82 = vmatmul.mubr.bf16.gmra.mxu0 %v43
    %v83 = vpop.f32.mrf.mxu0
    %v84 = vadd.f32 0.0, %v83
    %v85 = vpop.f32.mrf.mxu0
    %v86 = vpop.f32.mrf.mxu0
    %v87 = vpop.f32.mrf.mxu0
    %88 = vdwg.mxu0
    %v92 = vunpack.c.l.b16 %v35
    %v93 = vunpack.c.l.b16 %v36
    %v94 = vunpack.c.l.b16 %v37
    %v95 = vpack.c.b16 %v93, %v92
    %v96 = vpack.c.b16 %v94, %v94
    %vm98 = vcmask 195584
    %v100 = vsel %vm98, %v34, 0
    %v103 = vsel %vm45, %v96, 0
    %105 = vmatprep.subr.bf16.mxu0 0
    %106 = vmatpush1.bf16.msra.mxu0 0
    %107 = vmatprep.subr.bf16.mxu0 0
    %108 = vmatpush1.bf16.msra.mxu0 0
    %109 = vmatprep.subr.bf16.mxu0 0
    %110 = vmatpush1.bf16.msra.mxu0 0
    %111 = vmatprep.subr.bf16.mxu0 0
    %112 = vmatpush1.bf16.msra.mxu0 0
    %113 = vmatprep.subr.bf16.mxu0 0
    %114 = vmatpush1.bf16.msra.mxu0 0
    %115 = vmatprep.subr.bf16.mxu0 0
    %116 = vmatpush1.bf16.msra.mxu0 0
    %117 = vmatprep.subr.bf16.mxu0 0
    %118 = vmatpush1.bf16.msra.mxu0 %v103
    %119 = vmatprep.subr.bf16.mxu0 0
    %120 = vmatpush1.bf16.msra.mxu0 %v95
    %121 = vmatprep.subr.bf16.mxu0 0
    %122 = vmatpush2.bf16.msra.mxu0 0
    %123 = vmatprep.subr.bf16.mxu0 0
    %124 = vmatpush2.bf16.msra.mxu0 0
    %125 = vmatprep.subr.bf16.mxu0 0
    %126 = vmatpush2.bf16.msra.mxu0 0
    %127 = vmatprep.subr.bf16.mxu0 0
    %128 = vmatpush2.bf16.msra.mxu0 0
    %129 = vmatprep.subr.bf16.mxu0 0
    %130 = vmatpush2.bf16.msra.mxu0 0
    %131 = vmatprep.subr.bf16.mxu0 0
    %132 = vmatpush2.bf16.msra.mxu0 0
    %133 = vmatprep.subr.bf16.mxu0 0
    %134 = vmatpush2.bf16.msra.mxu0 0
    %135 = vmatprep.subr.bf16.mxu0 0
    %136 = vmatpush2.bf16.msra.mxu0 0
    %137 = vmatprep.mubr.bf16.mxu0 0
    %138 = vmatmul.mubr.bf16.gmra.mxu0 %v100
    %v139 = vpop.f32.mrf.mxu0
    %v140 = vadd.f32 %v84, %v139
    %v141 = vpop.f32.mrf.mxu0
    %v142 = vpop.f32.mrf.mxu0
    %v143 = vpop.f32.mrf.mxu0
    %144 = vdwg.mxu0
    %v145 = vlaneseq
    %v146 = vshrl.u32 %v145, 7
    %v147 = vsub.s32 0, %v146
    %v148 = vrot.slane %v31, %v147
    %v149 = vadd.f32 %v140, %v148
    %v150 = vld [vmem:[%s4] sm:$0xf]
    %v151 = vld [vmem:[%s4 + $0x4] sm:$0xf]
    %v152 = vld [vmem:[%s4 + $0x8] sm:$0xf]
    %v153 = vld [vmem:[%s4 + $0xc] sm:$0xf]
    %v154 = vld [vmem:[%s5] sm:$0xf]
    %v155 = vld [vmem:[%s5 + $0x4] sm:$0xf]
    %v156 = vld [vmem:[%s5 + $0x8] sm:$0xf]
    %v157 = vld [vmem:[%s5 + $0xc] sm:$0xf]
    %v158 = vld [vmem:[%s5 + $0x10] sm:$0xf]
    %v159 = vld [vmem:[%s5 + $0x14] sm:$0xf]
    %v160 = vld [vmem:[%s5 + $0x18] sm:$0xf]
    %v161 = vld [vmem:[%s5 + $0x1c] sm:$0xf]
    %vm162 = vcmask 261120
    %v163 = vsel %vm162, %v149, 0.0
    %164 = vadd.xlane.f32.xlu0 %v163
    %v165 = vpop.xlane.xlu0 %164
    %v166 = vrcp.pop 32.0
    %v167 = vmul.f32 %v165, %v166
    %v168 = vsub.f32 %v149, %v167
    %v169 = vmul.f32 %v168, %v168
    %v170 = vsel %vm162, %v169, 0.0
    %171 = vadd.xlane.f32.xlu0 %v170
    %v172 = vpop.xlane.xlu0 %171
    %v173 = vmul.f32 %v172, %v166
    %v174 = vadd.f32 %v173, 1e-05
    %v175 = vrsqrt.pop %v174
    %v176 = vmul.f32 %v168, %v175
    %v177 = vpack.c.bf16 %v176, %v176
    %v178 = vlaneseq
    %v179 = vshrl.u32 %v178, 7
    %v180 = vsub.s32 0, %v179
    %v181 = vrot.slane %v32, %v180
    %v186 = vunpack.c.l.b16 %v150
    %v187 = vunpack.c.l.b16 %v151
    %v188 = vunpack.c.l.b16 %v152
    %v189 = vunpack.c.l.b16 %v153
    %v190 = vpack.c.b16 %v187, %v186
    %v191 = vpack.c.b16 %v189, %v188
    %v195 = vsel %vm162, %v177, 0
    %197 = vmatprep.subr.bf16.mxu0 0
    %198 = vmatpush1.bf16.msra.mxu0 0
    %199 = vmatprep.subr.bf16.mxu0 0
    %200 = vmatpush1.bf16.msra.mxu0 0
    %201 = vmatprep.subr.bf16.mxu0 0
    %202 = vmatpush1.bf16.msra.mxu0 0
    %203 = vmatprep.subr.bf16.mxu0 0
    %204 = vmatpush1.bf16.msra.mxu0 0
    %205 = vmatprep.subr.bf16.mxu0 0
    %206 = vmatpush1.bf16.msra.mxu0 0
    %207 = vmatprep.subr.bf16.mxu0 0
    %208 = vmatpush1.bf16.msra.mxu0 0
    %209 = vmatprep.subr.bf16.mxu0 0
    %210 = vmatpush1.bf16.msra.mxu0 %v191
    %211 = vmatprep.subr.bf16.mxu0 0
    %212 = vmatpush1.bf16.msra.mxu0 %v190
    %213 = vmatprep.subr.bf16.mxu0 0
    %214 = vmatpush2.bf16.msra.mxu0 0
    %215 = vmatprep.subr.bf16.mxu0 0
    %216 = vmatpush2.bf16.msra.mxu0 0
    %217 = vmatprep.subr.bf16.mxu0 0
    %218 = vmatpush2.bf16.msra.mxu0 0
    %219 = vmatprep.subr.bf16.mxu0 0
    %220 = vmatpush2.bf16.msra.mxu0 0
    %221 = vmatprep.subr.bf16.mxu0 0
    %222 = vmatpush2.bf16.msra.mxu0 0
    %223 = vmatprep.subr.bf16.mxu0 0
    %224 = vmatpush2.bf16.msra.mxu0 0
    %225 = vmatprep.subr.bf16.mxu0 0
    %226 = vmatpush2.bf16.msra.mxu0 0
    %227 = vmatprep.subr.bf16.mxu0 0
    %228 = vmatpush2.bf16.msra.mxu0 0
    %229 = vmatprep.mubr.bf16.mxu0 0
    %230 = vmatmul.mubr.bf16.gmra.mxu0 %v195
    %v231 = vpop.f32.mrf.mxu0
    %v232 = vadd.f32 %v181, %v231
    %v233 = vpop.f32.mrf.mxu0
    %v234 = vpop.f32.mrf.mxu0
    %v235 = vpop.f32.mrf.mxu0
    %236 = vdwg.mxu0
    %v237 = vmax.f32 %v232, 0.0
    %v238 = vpack.c.bf16 %v237, %v237
    %v239 = vlaneseq
    %v240 = vshrl.u32 %v239, 7
    %v241 = vsub.s32 1, %v240
    %v242 = vrot.slane %v31, %v241
    %v251 = vunpack.c.l.b16 %v154
    %v252 = vunpack.c.l.b16 %v155
    %v253 = vunpack.c.l.b16 %v156
    %v254 = vunpack.c.l.b16 %v157
    %v255 = vunpack.c.l.b16 %v158
    %v256 = vunpack.c.l.b16 %v159
    %v257 = vunpack.c.l.b16 %v160
    %v258 = vunpack.c.l.b16 %v161
    %v259 = vpack.c.b16 %v252, %v251
    %v260 = vpack.c.b16 %v254, %v253
    %v261 = vpack.c.b16 %v256, %v255
    %v262 = vpack.c.b16 %v258, %v257
    %vm267 = vcmask 523264
    %v269 = vsel %vm267, %v238, 0
    %271 = vmatprep.subr.bf16.mxu0 0
    %272 = vmatpush1.bf16.msra.mxu0 0
    %273 = vmatprep.subr.bf16.mxu0 0
    %274 = vmatpush1.bf16.msra.mxu0 0
    %275 = vmatprep.subr.bf16.mxu0 0
    %276 = vmatpush1.bf16.msra.mxu0 0
    %277 = vmatprep.subr.bf16.mxu0 0
    %278 = vmatpush1.bf16.msra.mxu0 0
    %279 = vmatprep.subr.bf16.mxu0 0
    %280 = vmatpush1.bf16.msra.mxu0 %v262
    %281 = vmatprep.subr.bf16.mxu0 0
    %282 = vmatpush1.bf16.msra.mxu0 %v261
    %283 = vmatprep.subr.bf16.mxu0 0
    %284 = vmatpush1.bf16.msra.mxu0 %v260
    %285 = vmatprep.subr.bf16.mxu0 0
    %286 = vmatpush1.bf16.msra.mxu0 %v259
    %287 = vmatprep.subr.bf16.mxu0 0
    %288 = vmatpush2.bf16.msra.mxu0 0
    %289 = vmatprep.subr.bf16.mxu0 0
    %290 = vmatpush2.bf16.msra.mxu0 0
    %291 = vmatprep.subr.bf16.mxu0 0
    %292 = vmatpush2.bf16.msra.mxu0 0
    %293 = vmatprep.subr.bf16.mxu0 0
    %294 = vmatpush2.bf16.msra.mxu0 0
    %295 = vmatprep.subr.bf16.mxu0 0
    %296 = vmatpush2.bf16.msra.mxu0 0
    %297 = vmatprep.subr.bf16.mxu0 0
    %298 = vmatpush2.bf16.msra.mxu0 0
    %299 = vmatprep.subr.bf16.mxu0 0
    %300 = vmatpush2.bf16.msra.mxu0 0
    %301 = vmatprep.subr.bf16.mxu0 0
    %302 = vmatpush2.bf16.msra.mxu0 0
    %303 = vmatprep.mubr.bf16.mxu0 0
    %304 = vmatmul.mubr.bf16.gmra.mxu0 %v269
    %v305 = vpop.f32.mrf.mxu0
    %v306 = vadd.f32 %v242, %v305
    %v307 = vpop.f32.mrf.mxu0
    %v308 = vpop.f32.mrf.mxu0
    %v309 = vpop.f32.mrf.mxu0
    %310 = vdwg.mxu0
    %v311 = vadd.f32 %v149, %v306
    %s312 = scalar_lea.vmem %s4, 16
    %v313 = vld [vmem:[%s312] sm:$0xf]
    %v314 = vld [vmem:[%s312 + $0x4] sm:$0xf]
    %v315 = vld [vmem:[%s312 + $0x8] sm:$0xf]
    %v316 = vld [vmem:[%s312 + $0xc] sm:$0xf]
    %s317 = scalar_lea.vmem %s5, 32
    %v318 = vld [vmem:[%s317] sm:$0xf]
    %v319 = vld [vmem:[%s317 + $0x4] sm:$0xf]
    %v320 = vld [vmem:[%s317 + $0x8] sm:$0xf]
    %v321 = vld [vmem:[%s317 + $0xc] sm:$0xf]
    %v322 = vld [vmem:[%s317 + $0x10] sm:$0xf]
    %v323 = vld [vmem:[%s317 + $0x14] sm:$0xf]
    %v324 = vld [vmem:[%s317 + $0x18] sm:$0xf]
    %v325 = vld [vmem:[%s317 + $0x1c] sm:$0xf]
    %v326 = vsel %vm162, %v311, 0.0
    %327 = vadd.xlane.f32.xlu0 %v326
    %v328 = vpop.xlane.xlu0 %327
    %v329 = vmul.f32 %v328, %v166
    %v330 = vsub.f32 %v311, %v329
    %v331 = vmul.f32 %v330, %v330
    %v332 = vsel %vm162, %v331, 0.0
    %333 = vadd.xlane.f32.xlu0 %v332
    %v334 = vpop.xlane.xlu0 %333
    %v335 = vmul.f32 %v334, %v166
    %v336 = vadd.f32 %v335, 1e-05
    %v337 = vrsqrt.pop %v336
    %v338 = vmul.f32 %v330, %v337
    %v339 = vpack.c.bf16 %v338, %v338
    %v340 = vlaneseq
    %v341 = vshrl.u32 %v340, 7
    %v342 = vsub.s32 1, %v341
    %v343 = vrot.slane %v32, %v342
    %v348 = vunpack.c.l.b16 %v313
    %v349 = vunpack.c.l.b16 %v314
    %v350 = vunpack.c.l.b16 %v315
    %v351 = vunpack.c.l.b16 %v316
    %v352 = vpack.c.b16 %v349, %v348
    %v353 = vpack.c.b16 %v351, %v350
    %v357 = vsel %vm162, %v339, 0
    %359 = vmatprep.subr.bf16.mxu0 0
    %360 = vmatpush1.bf16.msra.mxu0 0
    %361 = vmatprep.subr.bf16.mxu0 0
    %362 = vmatpush1.bf16.msra.mxu0 0
    %363 = vmatprep.subr.bf16.mxu0 0
    %364 = vmatpush1.bf16.msra.mxu0 0
    %365 = vmatprep.subr.bf16.mxu0 0
    %366 = vmatpush1.bf16.msra.mxu0 0
    %367 = vmatprep.subr.bf16.mxu0 0
    %368 = vmatpush1.bf16.msra.mxu0 0
    %369 = vmatprep.subr.bf16.mxu0 0
    %370 = vmatpush1.bf16.msra.mxu0 0
    %371 = vmatprep.subr.bf16.mxu0 0
    %372 = vmatpush1.bf16.msra.mxu0 %v353
    %373 = vmatprep.subr.bf16.mxu0 0
    %374 = vmatpush1.bf16.msra.mxu0 %v352
    %375 = vmatprep.subr.bf16.mxu0 0
    %376 = vmatpush2.bf16.msra.mxu0 0
    %377 = vmatprep.subr.bf16.mxu0 0
    %378 = vmatpush2.bf16.msra.mxu0 0
    %379 = vmatprep.subr.bf16.mxu0 0
    %380 = vmatpush2.bf16.msra.mxu0 0
    %381 = vmatprep.subr.bf16.mxu0 0
    %382 = vmatpush2.bf16.msra.mxu0 0
    %383 = vmatprep.subr.bf16.mxu0 0
    %384 = vmatpush2.bf16.msra.mxu0 0
    %385 = vmatprep.subr.bf16.mxu0 0
    %386 = vmatpush2.bf16.msra.mxu0 0
    %387 = vmatprep.subr.bf16.mxu0 0
    %388 = vmatpush2.bf16.msra.mxu0 0
    %389 = vmatprep.subr.bf16.mxu0 0
    %390 = vmatpush2.bf16.msra.mxu0 0
    %391 = vmatprep.mubr.bf16.mxu0 0
    %392 = vmatmul.mubr.bf16.gmra.mxu0 %v357
    %v393 = vpop.f32.mrf.mxu0
    %v394 = vadd.f32 %v343, %v393
    %v395 = vpop.f32.mrf.mxu0
    %v396 = vpop.f32.mrf.mxu0
    %v397 = vpop.f32.mrf.mxu0
    %398 = vdwg.mxu0
    %v399 = vmax.f32 %v394, 0.0
    %v400 = vpack.c.bf16 %v399, %v399
    %v401 = vlaneseq
    %v402 = vshrl.u32 %v401, 7
    %v403 = vsub.s32 2, %v402
    %v404 = vrot.slane %v31, %v403
    %v413 = vunpack.c.l.b16 %v318
    %v414 = vunpack.c.l.b16 %v319
    %v415 = vunpack.c.l.b16 %v320
    %v416 = vunpack.c.l.b16 %v321
    %v417 = vunpack.c.l.b16 %v322
    %v418 = vunpack.c.l.b16 %v323
    %v419 = vunpack.c.l.b16 %v324
    %v420 = vunpack.c.l.b16 %v325
    %v421 = vpack.c.b16 %v414, %v413
    %v422 = vpack.c.b16 %v416, %v415
    %v423 = vpack.c.b16 %v418, %v417
    %v424 = vpack.c.b16 %v420, %v419
    %v430 = vsel %vm267, %v400, 0
    %432 = vmatprep.subr.bf16.mxu0 0
    %433 = vmatpush1.bf16.msra.mxu0 0
    %434 = vmatprep.subr.bf16.mxu0 0
    %435 = vmatpush1.bf16.msra.mxu0 0
    %436 = vmatprep.subr.bf16.mxu0 0
    %437 = vmatpush1.bf16.msra.mxu0 0
    %438 = vmatprep.subr.bf16.mxu0 0
    %439 = vmatpush1.bf16.msra.mxu0 0
    %440 = vmatprep.subr.bf16.mxu0 0
    %441 = vmatpush1.bf16.msra.mxu0 %v424
    %442 = vmatprep.subr.bf16.mxu0 0
    %443 = vmatpush1.bf16.msra.mxu0 %v423
    %444 = vmatprep.subr.bf16.mxu0 0
    %445 = vmatpush1.bf16.msra.mxu0 %v422
    %446 = vmatprep.subr.bf16.mxu0 0
    %447 = vmatpush1.bf16.msra.mxu0 %v421
    %448 = vmatprep.subr.bf16.mxu0 0
    %449 = vmatpush2.bf16.msra.mxu0 0
    %450 = vmatprep.subr.bf16.mxu0 0
    %451 = vmatpush2.bf16.msra.mxu0 0
    %452 = vmatprep.subr.bf16.mxu0 0
    %453 = vmatpush2.bf16.msra.mxu0 0
    %454 = vmatprep.subr.bf16.mxu0 0
    %455 = vmatpush2.bf16.msra.mxu0 0
    %456 = vmatprep.subr.bf16.mxu0 0
    %457 = vmatpush2.bf16.msra.mxu0 0
    %458 = vmatprep.subr.bf16.mxu0 0
    %459 = vmatpush2.bf16.msra.mxu0 0
    %460 = vmatprep.subr.bf16.mxu0 0
    %461 = vmatpush2.bf16.msra.mxu0 0
    %462 = vmatprep.subr.bf16.mxu0 0
    %463 = vmatpush2.bf16.msra.mxu0 0
    %464 = vmatprep.mubr.bf16.mxu0 0
    %465 = vmatmul.mubr.bf16.gmra.mxu0 %v430
    %v466 = vpop.f32.mrf.mxu0
    %v467 = vadd.f32 %v404, %v466
    %v468 = vpop.f32.mrf.mxu0
    %v469 = vpop.f32.mrf.mxu0
    %v470 = vpop.f32.mrf.mxu0
    %471 = vdwg.mxu0
    %v472 = vadd.f32 %v311, %v467
    %v473 = vsel %vm162, %v472, 0.0
    %474 = vadd.xlane.f32.xlu0 %v473
    %v475 = vpop.xlane.xlu0 %474
    %v476 = vmul.f32 %v475, %v166
    %v477 = vsub.f32 %v472, %v476
    %v478 = vmul.f32 %v477, %v477
    %v479 = vsel %vm162, %v478, 0.0
    %480 = vadd.xlane.f32.xlu0 %v479
    %v481 = vpop.xlane.xlu0 %480
    %v482 = vmul.f32 %v481, %v166
    %v483 = vadd.f32 %v482, 1e-05
    %v484 = vrsqrt.pop %v483
    %v485 = vmul.f32 %v477, %v484
    %v486 = vlaneseq
    %v487 = vshrl.u32 %v486, 7
    %v488 = vsub.s32 3, %v487
    %v489 = vrot.slane %v31, %v488
    %v490 = vmul.f32 %v485, %v489
    %v491 = vlaneseq
    %v492 = vshrl.u32 %v491, 7
    %v493 = vsub.s32 4, %v492
    %v494 = vrot.slane %v31, %v493
    %v495 = vadd.f32 %v490, %v494
    %496 = vst.msk [vmem:[#allocation2] sm:$0xff] %vm162, %v495
    // Predicated region
    $region34: #{tpu_custom_call.1} parent=1 // pred_check
      _
    $region35: #{tpu_custom_call.1} parent=1 // pred_check_branch
      %498 = sbr.rel (0) target = $region37
    $region36: #{tpu_custom_call.1} parent=1 // pred_region
      %s500 = ssub.s32 128, 128
      %501 = vsyncadd [#allocation3], %s500
      %s503 = sshll.u32 [#allocation2], 4
      %s504 = int_to_ptr.vmem [resolvable:$true] %s503
      %506 = dma.vmem_to_hbm [thread:$0]  %s504, 128, %s8, [#allocation3]
    $region37: #{tpu_custom_call.1} parent=1 // pred_fallthru
      _
    // Predicated region
    $region38: #{tpu_custom_call.1} parent=1 // pred_check
      _
    $region39: #{tpu_custom_call.1} parent=1 // pred_check_branch
      %508 = sbr.rel (0) target = $region41
    $region40: #{tpu_custom_call.1} parent=1 // pred_region
      %509 = dma.done [#allocation3], 128
    $region41: #{tpu_custom_call.1} parent=1 // pred_fallthru
      _
    %510 = vsyncpa [#allocation3], 1

</llo_original>
